<compile_context>
chip_gen: v6e
topology: v6e:2x2x1
jax: 0.10.0
libtpu: 0.0.40
codegen_flags: <defaults>
</compile_context>

<pallas_src>
import functools

import jax
import jax.numpy as jnp
from jax.experimental import pallas as pl
from jax.experimental.pallas import tpu as pltpu

EPS = 1e-5


def _round_up(x, m):
    return ((x + m - 1) // m) * m


# --------------------------------------------------------------------------
# Fast path: whole (B, Cin/Cout, L) tensor resident in VMEM, one invocation.
# --------------------------------------------------------------------------
def _fused_kernel(x_ref, w_ref, g_ref, beta_ref, o_ref, *, n_valid):
    """x: (B, Cin, L)  w: (Cout, Cin)  g/beta: (Cout, 1)  o: (B, Cout, L)."""
    B = x_ref.shape[0]
    w = w_ref[...]

    ys = []
    s = None
    q = None
    for b in range(B):  # B is small & static; unrolled
        y = jax.lax.dot_general(
            w, x_ref[b],
            dimension_numbers=(((1,), (0,)), ((), ())),
            preferred_element_type=jnp.float32)          # (Cout, L)
        ys.append(y)
        sy = jnp.sum(y, axis=1, keepdims=True)
        qy = jnp.sum(y * y, axis=1, keepdims=True)
        s = sy if s is None else s + sy
        q = qy if q is None else q + qy

    inv_n = 1.0 / n_valid
    mean = s * inv_n
    var = q * inv_n - mean * mean                        # biased var (training BN)
    scale = g_ref[...] * jax.lax.rsqrt(var + EPS)        # (Cout, 1)
    shift = beta_ref[...] - mean * scale                 # (Cout, 1)

    for b in range(B):
        o_ref[b] = jnp.maximum(ys[b] * scale + shift, 0.0)


# --------------------------------------------------------------------------
# Tiled path, pass 1: BN statistics only (no big output written).
# --------------------------------------------------------------------------
def _stats_kernel(x_ref, w_ref, g_ref, beta_ref, scale_ref, shift_ref,
                  sum_ref, sq_ref, *, n_valid):
    """x: (B, Cin, tl); outputs scale/shift: (Cout, 1)."""
    j = pl.program_id(0)
    nj = pl.num_programs(0)
    B = x_ref.shape[0]

    @pl.when(j == 0)
    def _():
        sum_ref[...] = jnp.zeros_like(sum_ref)
        sq_ref[...] = jnp.zeros_like(sq_ref)

    w = w_ref[...]
    s = None
    q = None
    for b in range(B):
        y = jax.lax.dot_general(
            w, x_ref[b],
            dimension_numbers=(((1,), (0,)), ((), ())),
            preferred_element_type=jnp.float32)          # (Cout, tl)
        sy = jnp.sum(y, axis=1, keepdims=True)
        qy = jnp.sum(y * y, axis=1, keepdims=True)
        s = sy if s is None else s + sy
        q = qy if q is None else q + qy
    sum_ref[...] += s
    sq_ref[...] += q

    @pl.when(j == nj - 1)
    def _():
        inv_n = 1.0 / n_valid
        mean = sum_ref[...] * inv_n
        var = sq_ref[...] * inv_n - mean * mean
        scale = g_ref[...] * jax.lax.rsqrt(var + EPS)
        scale_ref[...] = scale
        shift_ref[...] = beta_ref[...] - mean * scale


# --------------------------------------------------------------------------
# Tiled path, pass 2: apply conv + folded BN + ReLU (parallel over L tiles).
# --------------------------------------------------------------------------
def _apply_kernel(x_ref, w_ref, scale_ref, shift_ref, o_ref):
    """x: (B, Cin, tl)  scale/shift: (Cout, 1)  o: (B, Cout, tl)."""
    B = x_ref.shape[0]
    w = w_ref[...]
    scale = scale_ref[...]
    shift = shift_ref[...]
    for b in range(B):
        y = jax.lax.dot_general(
            w, x_ref[b],
            dimension_numbers=(((1,), (0,)), ((), ())),
            preferred_element_type=jnp.float32)
        o_ref[b] = jnp.maximum(y * scale + shift, 0.0)


# --------------------------------------------------------------------------
# Wrapper
# --------------------------------------------------------------------------
def conbr_block(x, w, b, g, beta, *,
                fused_vmem_cap_bytes=10 * 1024 * 1024,
                tile_vmem_cap_bytes=12 * 1024 * 1024):
    """Fused Conv1d(k=1) + BatchNorm1d(batch stats) + ReLU.

    x: (B, Cin, L) f32, w: (Cout, Cin) (PyTorch conv weight squeezed),
    b: (Cout,) conv bias (mathematically cancelled by training-mode BN, so it
    is accepted but unused), g/beta: (Cout,) BN affine. Returns (B, Cout, L).
    """
    del b  # exactly cancelled by the BatchNorm mean subtraction
    B, Cin, L = x.shape
    Cout = w.shape[0]

    x = x.astype(jnp.float32)
    w = w.astype(jnp.float32)
    g2 = g.reshape(Cout, 1).astype(jnp.float32)
    beta2 = beta.reshape(Cout, 1).astype(jnp.float32)
    n_valid = float(B * L)

    vmem_params = pltpu.CompilerParams(vmem_limit_bytes=32 * 1024 * 1024)

    # ---- fast path: one invocation, whole tensor in VMEM, no recompute ----
    fused_bytes = 4 * (B * (Cin + 2 * Cout) * L + Cout * Cin)
    if fused_bytes <= fused_vmem_cap_bytes:
        return pl.pallas_call(
            functools.partial(_fused_kernel, n_valid=n_valid),
            out_shape=jax.ShapeDtypeStruct((B, Cout, L), jnp.float32),
            grid=(1,),
            in_specs=[
                pl.BlockSpec((B, Cin, L), lambda i: (0, 0, 0)),
                pl.BlockSpec((Cout, Cin), lambda i: (0, 0)),
                pl.BlockSpec((Cout, 1), lambda i: (0, 0)),
                pl.BlockSpec((Cout, 1), lambda i: (0, 0)),
            ],
            out_specs=pl.BlockSpec((B, Cout, L), lambda i: (0, 0, 0)),
            compiler_params=vmem_params,
        )(x, w, g2, beta2)

    # ---- tiled two-pass path ----
    # Largest lane-aligned tile whose double-buffered in+out blocks fit budget.
    bytes_per_col = 2 * 4 * B * (Cin + Cout)          # 2 bufs * f32 * (x + out)
    tl = (tile_vmem_cap_bytes // bytes_per_col) // 128 * 128
    tl = max(128, min(tl, 4096))
    l_pad = _round_up(L, tl)
    if l_pad != L:
        # Zero-padded columns give y == 0 (no bias), so they add 0 to both BN
        # sums; the divisor below uses the true element count B*L.
        x = jnp.pad(x, ((0, 0), (0, 0), (0, l_pad - L)))
    nj = l_pad // tl

    # Pass 1: statistics -> folded (Cout, 1) scale / shift. No big output.
    scale, shift = pl.pallas_call(
        functools.partial(_stats_kernel, n_valid=n_valid),
        out_shape=(jax.ShapeDtypeStruct((Cout, 1), jnp.float32),
                   jax.ShapeDtypeStruct((Cout, 1), jnp.float32)),
        grid=(nj,),
        in_specs=[
            pl.BlockSpec((B, Cin, tl), lambda j: (0, 0, j)),
            pl.BlockSpec((Cout, Cin), lambda j: (0, 0)),
            pl.BlockSpec((Cout, 1), lambda j: (0, 0)),
            pl.BlockSpec((Cout, 1), lambda j: (0, 0)),
        ],
        out_specs=(pl.BlockSpec((Cout, 1), lambda j: (0, 0)),
                   pl.BlockSpec((Cout, 1), lambda j: (0, 0))),
        scratch_shapes=[pltpu.VMEM((Cout, 1), jnp.float32),   # running sum
                        pltpu.VMEM((Cout, 1), jnp.float32)],  # running sum sq
        compiler_params=pltpu.CompilerParams(
            dimension_semantics=("arbitrary",),
            vmem_limit_bytes=32 * 1024 * 1024),
    )(x, w, g2, beta2)

    # Pass 2: apply. Embarrassingly parallel over L tiles (megacore on v7x).
    out = pl.pallas_call(
        _apply_kernel,
        out_shape=jax.ShapeDtypeStruct((B, Cout, l_pad), jnp.float32),
        grid=(nj,),
        in_specs=[
            pl.BlockSpec((B, Cin, tl), lambda j: (0, 0, j)),
            pl.BlockSpec((Cout, Cin), lambda j: (0, 0)),
            pl.BlockSpec((Cout, 1), lambda j: (0, 0)),
            pl.BlockSpec((Cout, 1), lambda j: (0, 0)),
        ],
        out_specs=pl.BlockSpec((B, Cout, tl), lambda j: (0, 0, j)),
        compiler_params=pltpu.CompilerParams(
            dimension_semantics=("parallel",),
            vmem_limit_bytes=32 * 1024 * 1024),
    )(x, w, scale, shift)

    if l_pad != L:
        out = out[:, :, :L]
    return out


conbr_block_jit = jax.jit(
    conbr_block,
    static_argnames=("fused_vmem_cap_bytes", "tile_vmem_cap_bytes"))


def conbr_ref(x, w, b, g, beta):
    """Literal PyTorch conbr_block forward (conv bias kept, training-mode BN)."""
    y = jnp.einsum("oi,bil->bol", w, x, precision=jax.lax.Precision.HIGHEST)
    y = y + b[None, :, None]
    mean = jnp.mean(y, axis=(0, 2), keepdims=True)
    var = jnp.mean((y - mean) ** 2, axis=(0, 2), keepdims=True)
    yhat = (y - mean) / jnp.sqrt(var + EPS)
    return jnp.maximum(yhat * g[None, :, None] + beta[None, :, None], 0.0)


if __name__ == "__main__":
    key = jax.random.PRNGKey(0)
    k = jax.random.split(key, 10)

    # Case A: conbr_block(3, 64) as used by the surrounding model — B=2, L=128.
    # Small enough -> fused single-invocation fast path.
    B, Cin, Cout, L = 2, 3, 64, 128
    x = jax.random.normal(k[0], (B, Cin, L), jnp.float32)
    w = jax.random.normal(k[1], (Cout, Cin), jnp.float32) / jnp.sqrt(Cin)
    bias = 0.01 * jax.random.normal(k[2], (Cout,), jnp.float32)
    g = 1.0 + 0.1 * jax.random.normal(k[3], (Cout,), jnp.float32)
    beta = 0.1 * jax.random.normal(k[4], (Cout,), jnp.float32)

    out = conbr_block_jit(x, w, bias, g, beta)
    jax.block_until_ready(out)
    ref = conbr_ref(x, w, bias, g, beta)
    assert out.shape == (B, Cout, L)
    assert jnp.allclose(out, ref, rtol=1e-3, atol=1e-3), \
        float(jnp.max(jnp.abs(out - ref)))

    # Case B: force the tiled two-pass path (multi-tile + padded L: 320 -> 3x128).
    B2, Cin2, Cout2, L2 = 2, 16, 32, 320
    x2 = jax.random.normal(k[5], (B2, Cin2, L2), jnp.float32)
    w2 = jax.random.normal(k[6], (Cout2, Cin2), jnp.float32) / jnp.sqrt(Cin2)
    bias2 = 0.01 * jax.random.normal(k[7], (Cout2,), jnp.float32)
    g2 = 1.0 + 0.1 * jax.random.normal(k[8], (Cout2,), jnp.float32)
    beta2 = 0.1 * jax.random.normal(k[9], (Cout2,), jnp.float32)

    out2 = conbr_block_jit(x2, w2, bias2, g2, beta2,
                           fused_vmem_cap_bytes=0,          # force tiled path
                           tile_vmem_cap_bytes=100_000)     # force tl=128
    jax.block_until_ready(out2)
    ref2 = conbr_ref(x2, w2, bias2, g2, beta2)
    assert out2.shape == (B2, Cout2, L2)
    assert jnp.allclose(out2, ref2, rtol=1e-3, atol=1e-3), \
        float(jnp.max(jnp.abs(out2 - ref2)))

    print("KERNEL_OK")
</pallas_src>

<mosaic_0001>
module attributes {stable_mosaic.version = 11 : i64} {
  func.func @_fused_kernel(%arg0: i32, %arg1: memref<2x3x128xf32, #tpu.memory_space<vmem>>, %arg2: memref<64x3xf32, #tpu.memory_space<vmem>>, %arg3: memref<64x1xf32, #tpu.memory_space<vmem>>, %arg4: memref<64x1xf32, #tpu.memory_space<vmem>>, %arg5: memref<2x64x128xf32, #tpu.memory_space<vmem>>) attributes {dimension_semantics = [#tpu.dimension_semantics<arbitrary>], iteration_bounds = array<i64: 1>, scalar_prefetch = 0 : i64, scratch_operands = 0 : i64, tpu.core_type = #tpu.core_type<tc>, window_params = [{pipeline_mode = #tpu.pipeline_mode<synchronous>, transform_indices = @transform_0, window_bounds = array<i64: 2, 3, 128>}, {pipeline_mode = #tpu.pipeline_mode<synchronous>, transform_indices = @transform_1, window_bounds = array<i64: 64, 3>}, {pipeline_mode = #tpu.pipeline_mode<synchronous>, transform_indices = @transform_2, window_bounds = array<i64: 64, 1>}, {pipeline_mode = #tpu.pipeline_mode<synchronous>, transform_indices = @transform_3, window_bounds = array<i64: 64, 1>}, {pipeline_mode = #tpu.pipeline_mode<synchronous>, transform_indices = @transform_4, window_bounds = array<i64: 2, 64, 128>}]} {
    %c0 = arith.constant 0 : index
    %c0_0 = arith.constant 0 : index
    %0 = vector.load %arg2[%c0, %c0_0] : memref<64x3xf32, #tpu.memory_space<vmem>>, vector<64x3xf32>
    %c0_1 = arith.constant 0 : index
    %c0_2 = arith.constant 0 : index
    %c0_3 = arith.constant 0 : index
    %1 = vector.load %arg1[%c0_1, %c0_2, %c0_3] : memref<2x3x128xf32, #tpu.memory_space<vmem>>, vector<1x3x128xf32>
    %2 = vector.shape_cast %1 : vector<1x3x128xf32> to vector<3x128xf32>
    %cst = arith.constant dense<0.000000e+00> : vector<64x128xf32>
    %3 = tpu.matmul %0, %2, %cst {dimension_numbers = #tpu.dot_dimension_numbers<[1], [0], [0], [1], [0, 0, 1, 1], [], []>} : vector<64x3xf32>, vector<3x128xf32>, vector<64x128xf32> -> vector<64x128xf32>
    %cst_4 = arith.constant dense<0.000000e+00> : vector<64xf32>
    %4 = vector.multi_reduction <add>, %3, %cst_4 [1] : vector<64x128xf32> to vector<64xf32>
    %5 = vector.shape_cast %4 : vector<64xf32> to vector<64x1xf32>
    %6 = arith.mulf %3, %3 : vector<64x128xf32>
    %cst_5 = arith.constant dense<0.000000e+00> : vector<64xf32>
    %7 = vector.multi_reduction <add>, %6, %cst_5 [1] : vector<64x128xf32> to vector<64xf32>
    %8 = vector.shape_cast %7 : vector<64xf32> to vector<64x1xf32>
    %c1 = arith.constant 1 : index
    %c0_6 = arith.constant 0 : index
    %c0_7 = arith.constant 0 : index
    %9 = vector.load %arg1[%c1, %c0_6, %c0_7] : memref<2x3x128xf32, #tpu.memory_space<vmem>>, vector<1x3x128xf32>
    %10 = vector.shape_cast %9 : vector<1x3x128xf32> to vector<3x128xf32>
    %cst_8 = arith.constant dense<0.000000e+00> : vector<64x128xf32>
    %11 = tpu.matmul %0, %10, %cst_8 {dimension_numbers = #tpu.dot_dimension_numbers<[1], [0], [0], [1], [0, 0, 1, 1], [], []>} : vector<64x3xf32>, vector<3x128xf32>, vector<64x128xf32> -> vector<64x128xf32>
    %cst_9 = arith.constant dense<0.000000e+00> : vector<64xf32>
    %12 = vector.multi_reduction <add>, %11, %cst_9 [1] : vector<64x128xf32> to vector<64xf32>
    %13 = vector.shape_cast %12 : vector<64xf32> to vector<64x1xf32>
    %14 = arith.mulf %11, %11 : vector<64x128xf32>
    %cst_10 = arith.constant dense<0.000000e+00> : vector<64xf32>
    %15 = vector.multi_reduction <add>, %14, %cst_10 [1] : vector<64x128xf32> to vector<64xf32>
    %16 = vector.shape_cast %15 : vector<64xf32> to vector<64x1xf32>
    %17 = arith.addf %5, %13 : vector<64x1xf32>
    %18 = arith.addf %8, %16 : vector<64x1xf32>
    %cst_11 = arith.constant 3.906250e-03 : f32
    %19 = vector.broadcast %cst_11 : f32 to vector<64x1xf32>
    %20 = arith.mulf %17, %19 : vector<64x1xf32>
    %cst_12 = arith.constant 3.906250e-03 : f32
    %21 = vector.broadcast %cst_12 : f32 to vector<64x1xf32>
    %22 = arith.mulf %18, %21 : vector<64x1xf32>
    %23 = arith.mulf %20, %20 : vector<64x1xf32>
    %24 = arith.subf %22, %23 : vector<64x1xf32>
    %c0_13 = arith.constant 0 : index
    %c0_14 = arith.constant 0 : index
    %25 = vector.load %arg3[%c0_13, %c0_14] : memref<64x1xf32, #tpu.memory_space<vmem>>, vector<64x1xf32>
    %cst_15 = arith.constant 9.99999974E-6 : f32
    %26 = vector.broadcast %cst_15 : f32 to vector<64x1xf32>
    %27 = arith.addf %24, %26 : vector<64x1xf32>
    %28 = math.rsqrt %27 : vector<64x1xf32>
    %29 = arith.mulf %25, %28 : vector<64x1xf32>
    %c0_16 = arith.constant 0 : index
    %c0_17 = arith.constant 0 : index
    %30 = vector.load %arg4[%c0_16, %c0_17] : memref<64x1xf32, #tpu.memory_space<vmem>>, vector<64x1xf32>
    %31 = arith.mulf %20, %29 : vector<64x1xf32>
    %32 = arith.subf %30, %31 : vector<64x1xf32>
    %33 = vector.broadcast %29 : vector<64x1xf32> to vector<64x128xf32>
    %34 = arith.mulf %3, %33 : vector<64x128xf32>
    %35 = vector.broadcast %32 : vector<64x1xf32> to vector<64x128xf32>
    %36 = arith.addf %34, %35 : vector<64x128xf32>
    %cst_18 = arith.constant 0.000000e+00 : f32
    %37 = vector.broadcast %cst_18 : f32 to vector<64x128xf32>
    %38 = arith.maximumf %36, %37 : vector<64x128xf32>
    %c0_19 = arith.constant 0 : index
    %c0_20 = arith.constant 0 : index
    %c0_21 = arith.constant 0 : index
    %39 = vector.load %arg5[%c0_19, %c0_20, %c0_21] : memref<2x64x128xf32, #tpu.memory_space<vmem>>, vector<1x64x128xf32>
    %40 = vector.shape_cast %39 : vector<1x64x128xf32> to vector<64x128xf32>
    %41 = vector.shape_cast %38 : vector<64x128xf32> to vector<1x64x128xf32>
    tpu.vector_store %arg5[%c0_19, %c0_20, %c0_21], %41 {strides = array<i32>} : memref<2x64x128xf32, #tpu.memory_space<vmem>>, vector<1x64x128xf32>,
    %42 = vector.broadcast %29 : vector<64x1xf32> to vector<64x128xf32>
    %43 = arith.mulf %11, %42 : vector<64x128xf32>
    %44 = vector.broadcast %32 : vector<64x1xf32> to vector<64x128xf32>
    %45 = arith.addf %43, %44 : vector<64x128xf32>
    %cst_22 = arith.constant 0.000000e+00 : f32
    %46 = vector.broadcast %cst_22 : f32 to vector<64x128xf32>
    %47 = arith.maximumf %45, %46 : vector<64x128xf32>
    %c1_23 = arith.constant 1 : index
    %c0_24 = arith.constant 0 : index
    %c0_25 = arith.constant 0 : index
    %48 = vector.load %arg5[%c1_23, %c0_24, %c0_25] : memref<2x64x128xf32, #tpu.memory_space<vmem>>, vector<1x64x128xf32>
    %49 = vector.shape_cast %48 : vector<1x64x128xf32> to vector<64x128xf32>
    %50 = vector.shape_cast %47 : vector<64x128xf32> to vector<1x64x128xf32>
    tpu.vector_store %arg5[%c1_23, %c0_24, %c0_25], %50 {strides = array<i32>} : memref<2x64x128xf32, #tpu.memory_space<vmem>>, vector<1x64x128xf32>,
    return
  }
  func.func @transform_0(%arg0: i32) -> (i32, i32, i32) {
    %c0_i32 = arith.constant 0 : i32
    %c0_i32_0 = arith.constant 0 : i32
    %c0_i32_1 = arith.constant 0 : i32
    %c0_i32_2 = arith.constant 0 : i32
    return %c0_i32, %c0_i32_0, %c0_i32_1 : i32, i32, i32
  }
  func.func @transform_1(%arg0: i32) -> (i32, i32) {
    %c0_i32 = arith.constant 0 : i32
    %c0_i32_0 = arith.constant 0 : i32
    %c0_i32_1 = arith.constant 0 : i32
    return %c0_i32, %c0_i32_0 : i32, i32
  }
  func.func @transform_2(%arg0: i32) -> (i32, i32) {
    %c0_i32 = arith.constant 0 : i32
    %c0_i32_0 = arith.constant 0 : i32
    %c0_i32_1 = arith.constant 0 : i32
    return %c0_i32, %c0_i32_0 : i32, i32
  }
  func.func @transform_3(%arg0: i32) -> (i32, i32) {
    %c0_i32 = arith.constant 0 : i32
    %c0_i32_0 = arith.constant 0 : i32
    %c0_i32_1 = arith.constant 0 : i32
    return %c0_i32, %c0_i32_0 : i32, i32
  }
  func.func @transform_4(%arg0: i32) -> (i32, i32, i32) {
    %c0_i32 = arith.constant 0 : i32
    %c0_i32_0 = arith.constant 0 : i32
    %c0_i32_1 = arith.constant 0 : i32
    %c0_i32_2 = arith.constant 0 : i32
    return %c0_i32, %c0_i32_0, %c0_i32_1 : i32, i32, i32
  }
}

</mosaic_0001>

<llo_original>
// kernel: conbr_block.1
$region0: #{conbr_block.1}
  #allocation0 [shape = 'u32[]', space=smem, size = 0x4, offset = 0x4, fixed_abs, tag = 'smem constant byte address 0x4 - core index']
  #allocation1 [shape = 'u32[144,128]{1,0:T(1,128)}', space=vmem, size = 0x12000, scoped, tag = 'internal scratch']
  %s0 = inlined_call_operand.vmem [shape: f32[2,3,128], index: 0, kind: input, shape index: {}]
  %s1 = inlined_call_operand.vmem [shape: f32[64,3], index: 1, kind: input, shape index: {}]
  %s2 = inlined_call_operand.vmem [shape: f32[64,1], index: 2, kind: input, shape index: {}]
  %s3 = inlined_call_operand.vmem [shape: f32[64,1], index: 3, kind: input, shape index: {}]
  %s4 = inlined_call_operand.hbm [shape: f32[2,64,128], index: 4, kind: output, shape index: {}]
  %s5 = sld [smem:[#allocation0]]
  $region26: #{conbr_block.1} parent=0
    _
  %s7 = ssub.s32 1, %s5
  %s8 = scalar_select 0, %s7, %s5
  $region1: #{conbr_block.1} parent=0
    #allocation2 [shape = 'u8[65536]{0}', space=vmem, size = 0x10000, scoped, tag = 'output window, operand 0, single buffered']
    #allocation3 [shape = 's32[1]{0}', space=sflag, size = 0x4, scoped, tag = 'scoped memory for conbr_block.1']
    %9 = vsyncpa [#allocation3], 0
    // Predicated region
    $region2: #{conbr_block.1} parent=1 // pred_check
      _
    $region3: #{conbr_block.1} parent=1 // pred_check_branch
      %11 = sbr.rel (0) target = $region5
    $region4: #{conbr_block.1} parent=1 // pred_region
      _
    $region5: #{conbr_block.1} parent=1 // pred_fallthru
      _
    // Predicated region
    $region6: #{conbr_block.1} parent=1 // pred_check
      _
    $region7: #{conbr_block.1} parent=1 // pred_check_branch
      %13 = sbr.rel (0) target = $region9
    $region8: #{conbr_block.1} parent=1 // pred_region
      _
    $region9: #{conbr_block.1} parent=1 // pred_fallthru
      _
    // Predicated region
    $region10: #{conbr_block.1} parent=1 // pred_check
      _
    $region11: #{conbr_block.1} parent=1 // pred_check_branch
      %15 = sbr.rel (0) target = $region13
    $region12: #{conbr_block.1} parent=1 // pred_region
      _
    $region13: #{conbr_block.1} parent=1 // pred_fallthru
      _
    // Predicated region
    $region14: #{conbr_block.1} parent=1 // pred_check
      _
    $region15: #{conbr_block.1} parent=1 // pred_check_branch
      %17 = sbr.rel (0) target = $region17
    $region16: #{conbr_block.1} parent=1 // pred_region
      _
    $region17: #{conbr_block.1} parent=1 // pred_fallthru
      _
    %v18 = vld [vmem:[%s1] sm:$0xff]
    %v19 = vld [vmem:[%s1 + $0x8] sm:$0xff]
    %v20 = vld [vmem:[%s1 + $0x10] sm:$0xff]
    %v21 = vld [vmem:[%s1 + $0x18] sm:$0xff]
    %v22 = vld [vmem:[%s1 + $0x20] sm:$0xff]
    %v23 = vld [vmem:[%s1 + $0x28] sm:$0xff]
    %v24 = vld [vmem:[%s1 + $0x30] sm:$0xff]
    %v25 = vld [vmem:[%s1 + $0x38] sm:$0xff]
    %v26 = vld [vmem:[%s0] sm:$0x7]
    %vm27 = vcmask 23552
    %v29 = vsel %vm27, %v18, 0
    %v32 = vsel %vm27, %v19, 0
    %v35 = vsel %vm27, %v20, 0
    %v38 = vsel %vm27, %v21, 0
    %v41 = vsel %vm27, %v22, 0
    %v44 = vsel %vm27, %v23, 0
    %v47 = vsel %vm27, %v24, 0
    %v50 = vsel %vm27, %v25, 0
    %vm52 = vcmask 1042432
    %v54 = vsel %vm52, %v26, 0
    %56 = vmatprep.subr.mxu0 0.0
    %57 = vmatpush1.msra.mxu0 0.0
    %58 = vmatprep.subr.mxu0 0.0
    %59 = vmatpush1.msra.mxu0 0.0
    %60 = vmatprep.subr.mxu0 0.0
    %61 = vmatpush1.msra.mxu0 0.0
    %62 = vmatprep.subr.mxu0 0.0
    %63 = vmatpush1.msra.mxu0 0.0
    %64 = vmatprep.subr.mxu0 0.0
    %65 = vmatpush1.msra.mxu0 0.0
    %66 = vmatprep.subr.mxu0 0.0
    %67 = vmatpush1.msra.mxu0 0.0
    %68 = vmatprep.subr.mxu0 0.0
    %69 = vmatpush1.msra.mxu0 0.0
    %70 = vmatprep.subr.mxu0 0.0
    %71 = vmatpush1.msra.mxu0 0.0
    %72 = vmatprep.subr.mxu0 0.0
    %73 = vmatpush1.msra.mxu0 0.0
    %74 = vmatprep.subr.mxu0 0.0
    %75 = vmatpush1.msra.mxu0 0.0
    %76 = vmatprep.subr.mxu0 0.0
    %77 = vmatpush1.msra.mxu0 0.0
    %78 = vmatprep.subr.mxu0 0.0
    %79 = vmatpush1.msra.mxu0 0.0
    %80 = vmatprep.subr.mxu0 0.0
    %81 = vmatpush1.msra.mxu0 0.0
    %82 = vmatprep.subr.mxu0 0.0
    %83 = vmatpush1.msra.mxu0 0.0
    %84 = vmatprep.subr.mxu0 0.0
    %85 = vmatpush1.msra.mxu0 0.0
    %86 = vmatprep.subr.mxu0 0.0
    %87 = vmatpush1.msra.mxu0 %v54
    %88 = vmatprep.subr.mxu0 0.0
    %89 = vmatpush2.msra.mxu0 0.0
    %90 = vmatprep.subr.mxu0 0.0
    %91 = vmatpush2.msra.mxu0 0.0
    %92 = vmatprep.subr.mxu0 0.0
    %93 = vmatpush2.msra.mxu0 0.0
    %94 = vmatprep.subr.mxu0 0.0
    %95 = vmatpush2.msra.mxu0 0.0
    %96 = vmatprep.subr.mxu0 0.0
    %97 = vmatpush2.msra.mxu0 0.0
    %98 = vmatprep.subr.mxu0 0.0
    %99 = vmatpush2.msra.mxu0 0.0
    %100 = vmatprep.subr.mxu0 0.0
    %101 = vmatpush2.msra.mxu0 0.0
    %102 = vmatprep.subr.mxu0 0.0
    %103 = vmatpush2.msra.mxu0 0.0
    %104 = vmatprep.subr.mxu0 0.0
    %105 = vmatpush2.msra.mxu0 0.0
    %106 = vmatprep.subr.mxu0 0.0
    %107 = vmatpush2.msra.mxu0 0.0
    %108 = vmatprep.subr.mxu0 0.0
    %109 = vmatpush2.msra.mxu0 0.0
    %110 = vmatprep.subr.mxu0 0.0
    %111 = vmatpush2.msra.mxu0 0.0
    %112 = vmatprep.subr.mxu0 0.0
    %113 = vmatpush2.msra.mxu0 0.0
    %114 = vmatprep.subr.mxu0 0.0
    %115 = vmatpush2.msra.mxu0 0.0
    %116 = vmatprep.subr.mxu0 0.0
    %117 = vmatpush2.msra.mxu0 0.0
    %118 = vmatprep.subr.mxu0 0.0
    %119 = vmatpush2.msra.mxu0 0.0
    %120 = vmatprep.mubr.f32.mxu0 0.0
    %121 = vmatmul.mubr.f32.gmra.mxu0 %v29
    %v122 = vpop.f32.mrf.mxu0
    %v123 = vadd.f32 0.0, %v122
    %v124 = vpop.f32.mrf.mxu0
    %125 = vmatprep.mubr.f32.mxu0 0.0
    %126 = vmatmul.mubr.f32.gmra.mxu0 %v32
    %v127 = vpop.f32.mrf.mxu0
    %v128 = vadd.f32 0.0, %v127
    %v129 = vpop.f32.mrf.mxu0
    %130 = vmatprep.mubr.f32.mxu0 0.0
    %131 = vmatmul.mubr.f32.gmra.mxu0 %v35
    %v132 = vpop.f32.mrf.mxu0
    %v133 = vadd.f32 0.0, %v132
    %v134 = vpop.f32.mrf.mxu0
    %135 = vmatprep.mubr.f32.mxu0 0.0
    %136 = vmatmul.mubr.f32.gmra.mxu0 %v38
    %v137 = vpop.f32.mrf.mxu0
    %v138 = vadd.f32 0.0, %v137
    %v139 = vpop.f32.mrf.mxu0
    %140 = vmatprep.mubr.f32.mxu0 0.0
    %141 = vmatmul.mubr.f32.gmra.mxu0 %v41
    %v142 = vpop.f32.mrf.mxu0
    %v143 = vadd.f32 0.0, %v142
    %v144 = vpop.f32.mrf.mxu0
    %145 = vmatprep.mubr.f32.mxu0 0.0
    %146 = vmatmul.mubr.f32.gmra.mxu0 %v44
    %v147 = vpop.f32.mrf.mxu0
    %v148 = vadd.f32 0.0, %v147
    %v149 = vpop.f32.mrf.mxu0
    %150 = vmatprep.mubr.f32.mxu0 0.0
    %151 = vmatmul.mubr.f32.gmra.mxu0 %v47
    %v152 = vpop.f32.mrf.mxu0
    %v153 = vadd.f32 0.0, %v152
    %v154 = vpop.f32.mrf.mxu0
    %155 = vmatprep.mubr.f32.mxu0 0.0
    %156 = vmatmul.mubr.f32.gmra.mxu0 %v50
    %v157 = vpop.f32.mrf.mxu0
    %v158 = vadd.f32 0.0, %v157
    %v159 = vpop.f32.mrf.mxu0
    %160 = vdwg.mxu0
    %161 = vadd.xlane.f32.xlu0 %v123
    %v162 = vpop.xlane.xlu0 %161
    %163 = vadd.xlane.f32.xlu0 %v128
    %v164 = vpop.xlane.xlu0 %163
    %165 = vadd.xlane.f32.xlu0 %v133
    %v166 = vpop.xlane.xlu0 %165
    %167 = vadd.xlane.f32.xlu0 %v138
    %v168 = vpop.xlane.xlu0 %167
    %169 = vadd.xlane.f32.xlu0 %v143
    %v170 = vpop.xlane.xlu0 %169
    %171 = vadd.xlane.f32.xlu0 %v148
    %v172 = vpop.xlane.xlu0 %171
    %173 = vadd.xlane.f32.xlu0 %v153
    %v174 = vpop.xlane.xlu0 %173
    %175 = vadd.xlane.f32.xlu0 %v158
    %v176 = vpop.xlane.xlu0 %175
    %v177 = vmul.f32 %v123, %v123
    %v178 = vmul.f32 %v128, %v128
    %v179 = vmul.f32 %v133, %v133
    %v180 = vmul.f32 %v138, %v138
    %v181 = vmul.f32 %v143, %v143
    %v182 = vmul.f32 %v148, %v148
    %v183 = vmul.f32 %v153, %v153
    %v184 = vmul.f32 %v158, %v158
    %185 = vadd.xlane.f32.xlu0 %v177
    %v186 = vpop.xlane.xlu0 %185
    %187 = vadd.xlane.f32.xlu0 %v178
    %v188 = vpop.xlane.xlu0 %187
    %189 = vadd.xlane.f32.xlu0 %v179
    %v190 = vpop.xlane.xlu0 %189
    %191 = vadd.xlane.f32.xlu0 %v180
    %v192 = vpop.xlane.xlu0 %191
    %193 = vadd.xlane.f32.xlu0 %v181
    %v194 = vpop.xlane.xlu0 %193
    %195 = vadd.xlane.f32.xlu0 %v182
    %v196 = vpop.xlane.xlu0 %195
    %197 = vadd.xlane.f32.xlu0 %v183
    %v198 = vpop.xlane.xlu0 %197
    %199 = vadd.xlane.f32.xlu0 %v184
    %v200 = vpop.xlane.xlu0 %199
    %s201 = scalar_lea.vmem %s0, 4
    %v202 = vld [vmem:[%s201] sm:$0x7]
    %v204 = vsel %vm52, %v202, 0
    %206 = vmatprep.subr.mxu0 0.0
    %207 = vmatpush1.msra.mxu0 0.0
    %208 = vmatprep.subr.mxu0 0.0
    %209 = vmatpush1.msra.mxu0 0.0
    %210 = vmatprep.subr.mxu0 0.0
    %211 = vmatpush1.msra.mxu0 0.0
    %212 = vmatprep.subr.mxu0 0.0
    %213 = vmatpush1.msra.mxu0 0.0
    %214 = vmatprep.subr.mxu0 0.0
    %215 = vmatpush1.msra.mxu0 0.0
    %216 = vmatprep.subr.mxu0 0.0
    %217 = vmatpush1.msra.mxu0 0.0
    %218 = vmatprep.subr.mxu0 0.0
    %219 = vmatpush1.msra.mxu0 0.0
    %220 = vmatprep.subr.mxu0 0.0
    %221 = vmatpush1.msra.mxu0 0.0
    %222 = vmatprep.subr.mxu0 0.0
    %223 = vmatpush1.msra.mxu0 0.0
    %224 = vmatprep.subr.mxu0 0.0
    %225 = vmatpush1.msra.mxu0 0.0
    %226 = vmatprep.subr.mxu0 0.0
    %227 = vmatpush1.msra.mxu0 0.0
    %228 = vmatprep.subr.mxu0 0.0
    %229 = vmatpush1.msra.mxu0 0.0
    %230 = vmatprep.subr.mxu0 0.0
    %231 = vmatpush1.msra.mxu0 0.0
    %232 = vmatprep.subr.mxu0 0.0
    %233 = vmatpush1.msra.mxu0 0.0
    %234 = vmatprep.subr.mxu0 0.0
    %235 = vmatpush1.msra.mxu0 0.0
    %236 = vmatprep.subr.mxu0 0.0
    %237 = vmatpush1.msra.mxu0 %v204
    %238 = vmatprep.subr.mxu0 0.0
    %239 = vmatpush2.msra.mxu0 0.0
    %240 = vmatprep.subr.mxu0 0.0
    %241 = vmatpush2.msra.mxu0 0.0
    %242 = vmatprep.subr.mxu0 0.0
    %243 = vmatpush2.msra.mxu0 0.0
    %244 = vmatprep.subr.mxu0 0.0
    %245 = vmatpush2.msra.mxu0 0.0
    %246 = vmatprep.subr.mxu0 0.0
    %247 = vmatpush2.msra.mxu0 0.0
    %248 = vmatprep.subr.mxu0 0.0
    %249 = vmatpush2.msra.mxu0 0.0
    %250 = vmatprep.subr.mxu0 0.0
    %251 = vmatpush2.msra.mxu0 0.0
    %252 = vmatprep.subr.mxu0 0.0
    %253 = vmatpush2.msra.mxu0 0.0
    %254 = vmatprep.subr.mxu0 0.0
    %255 = vmatpush2.msra.mxu0 0.0
    %256 = vmatprep.subr.mxu0 0.0
    %257 = vmatpush2.msra.mxu0 0.0
    %258 = vmatprep.subr.mxu0 0.0
    %259 = vmatpush2.msra.mxu0 0.0
    %260 = vmatprep.subr.mxu0 0.0
    %261 = vmatpush2.msra.mxu0 0.0
    %262 = vmatprep.subr.mxu0 0.0
    %263 = vmatpush2.msra.mxu0 0.0
    %264 = vmatprep.subr.mxu0 0.0
    %265 = vmatpush2.msra.mxu0 0.0
    %266 = vmatprep.subr.mxu0 0.0
    %267 = vmatpush2.msra.mxu0 0.0
    %268 = vmatprep.subr.mxu0 0.0
    %269 = vmatpush2.msra.mxu0 0.0
    %270 = vmatprep.mubr.f32.mxu0 0.0
    %271 = vmatmul.mubr.f32.gmra.mxu0 %v29
    %v272 = vpop.f32.mrf.mxu0
    %v273 = vadd.f32 0.0, %v272
    %v274 = vpop.f32.mrf.mxu0
    %275 = vmatprep.mubr.f32.mxu0 0.0
    %276 = vmatmul.mubr.f32.gmra.mxu0 %v32
    %v277 = vpop.f32.mrf.mxu0
    %v278 = vadd.f32 0.0, %v277
    %v279 = vpop.f32.mrf.mxu0
    %280 = vmatprep.mubr.f32.mxu0 0.0
    %281 = vmatmul.mubr.f32.gmra.mxu0 %v35
    %v282 = vpop.f32.mrf.mxu0
    %v283 = vadd.f32 0.0, %v282
    %v284 = vpop.f32.mrf.mxu0
    %285 = vmatprep.mubr.f32.mxu0 0.0
    %286 = vmatmul.mubr.f32.gmra.mxu0 %v38
    %v287 = vpop.f32.mrf.mxu0
    %v288 = vadd.f32 0.0, %v287
    %v289 = vpop.f32.mrf.mxu0
    %290 = vmatprep.mubr.f32.mxu0 0.0
    %291 = vmatmul.mubr.f32.gmra.mxu0 %v41
    %v292 = vpop.f32.mrf.mxu0
    %v293 = vadd.f32 0.0, %v292
    %v294 = vpop.f32.mrf.mxu0
    %295 = vmatprep.mubr.f32.mxu0 0.0
    %296 = vmatmul.mubr.f32.gmra.mxu0 %v44
    %v297 = vpop.f32.mrf.mxu0
    %v298 = vadd.f32 0.0, %v297
    %v299 = vpop.f32.mrf.mxu0
    %300 = vmatprep.mubr.f32.mxu0 0.0
    %301 = vmatmul.mubr.f32.gmra.mxu0 %v47
    %v302 = vpop.f32.mrf.mxu0
    %v303 = vadd.f32 0.0, %v302
    %v304 = vpop.f32.mrf.mxu0
    %305 = vmatprep.mubr.f32.mxu0 0.0
    %306 = vmatmul.mubr.f32.gmra.mxu0 %v50
    %v307 = vpop.f32.mrf.mxu0
    %v308 = vadd.f32 0.0, %v307
    %v309 = vpop.f32.mrf.mxu0
    %310 = vdwg.mxu0
    %311 = vadd.xlane.f32.xlu0 %v273
    %v312 = vpop.xlane.xlu0 %311
    %313 = vadd.xlane.f32.xlu0 %v278
    %v314 = vpop.xlane.xlu0 %313
    %315 = vadd.xlane.f32.xlu0 %v283
    %v316 = vpop.xlane.xlu0 %315
    %317 = vadd.xlane.f32.xlu0 %v288
    %v318 = vpop.xlane.xlu0 %317
    %319 = vadd.xlane.f32.xlu0 %v293
    %v320 = vpop.xlane.xlu0 %319
    %321 = vadd.xlane.f32.xlu0 %v298
    %v322 = vpop.xlane.xlu0 %321
    %323 = vadd.xlane.f32.xlu0 %v303
    %v324 = vpop.xlane.xlu0 %323
    %325 = vadd.xlane.f32.xlu0 %v308
    %v326 = vpop.xlane.xlu0 %325
    %v327 = vmul.f32 %v273, %v273
    %v328 = vmul.f32 %v278, %v278
    %v329 = vmul.f32 %v283, %v283
    %v330 = vmul.f32 %v288, %v288
    %v331 = vmul.f32 %v293, %v293
    %v332 = vmul.f32 %v298, %v298
    %v333 = vmul.f32 %v303, %v303
    %v334 = vmul.f32 %v308, %v308
    %335 = vadd.xlane.f32.xlu0 %v327
    %v336 = vpop.xlane.xlu0 %335
    %337 = vadd.xlane.f32.xlu0 %v328
    %v338 = vpop.xlane.xlu0 %337
    %339 = vadd.xlane.f32.xlu0 %v329
    %v340 = vpop.xlane.xlu0 %339
    %341 = vadd.xlane.f32.xlu0 %v330
    %v342 = vpop.xlane.xlu0 %341
    %343 = vadd.xlane.f32.xlu0 %v331
    %v344 = vpop.xlane.xlu0 %343
    %345 = vadd.xlane.f32.xlu0 %v332
    %v346 = vpop.xlane.xlu0 %345
    %347 = vadd.xlane.f32.xlu0 %v333
    %v348 = vpop.xlane.xlu0 %347
    %349 = vadd.xlane.f32.xlu0 %v334
    %v350 = vpop.xlane.xlu0 %349
    %v351 = vadd.f32 %v162, %v312
    %v352 = vadd.f32 %v164, %v314
    %v353 = vadd.f32 %v166, %v316
    %v354 = vadd.f32 %v168, %v318
    %v355 = vadd.f32 %v170, %v320
    %v356 = vadd.f32 %v172, %v322
    %v357 = vadd.f32 %v174, %v324
    %v358 = vadd.f32 %v176, %v326
    %v359 = vadd.f32 %v186, %v336
    %v360 = vadd.f32 %v188, %v338
    %v361 = vadd.f32 %v190, %v340
    %v362 = vadd.f32 %v192, %v342
    %v363 = vadd.f32 %v194, %v344
    %v364 = vadd.f32 %v196, %v346
    %v365 = vadd.f32 %v198, %v348
    %v366 = vadd.f32 %v200, %v350
    %v367 = vmul.f32 %v351, 0.00390625
    %v368 = vmul.f32 %v352, 0.00390625
    %v369 = vmul.f32 %v353, 0.00390625
    %v370 = vmul.f32 %v354, 0.00390625
    %v371 = vmul.f32 %v355, 0.00390625
    %v372 = vmul.f32 %v356, 0.00390625
    %v373 = vmul.f32 %v357, 0.00390625
    %v374 = vmul.f32 %v358, 0.00390625
    %v375 = vmul.f32 %v359, 0.00390625
    %v376 = vmul.f32 %v360, 0.00390625
    %v377 = vmul.f32 %v361, 0.00390625
    %v378 = vmul.f32 %v362, 0.00390625
    %v379 = vmul.f32 %v363, 0.00390625
    %v380 = vmul.f32 %v364, 0.00390625
    %v381 = vmul.f32 %v365, 0.00390625
    %v382 = vmul.f32 %v366, 0.00390625
    %v383 = vmul.f32 %v367, %v367
    %v384 = vmul.f32 %v368, %v368
    %v385 = vmul.f32 %v369, %v369
    %v386 = vmul.f32 %v370, %v370
    %v387 = vmul.f32 %v371, %v371
    %v388 = vmul.f32 %v372, %v372
    %v389 = vmul.f32 %v373, %v373
    %v390 = vmul.f32 %v374, %v374
    %v391 = vsub.f32 %v375, %v383
    %v392 = vsub.f32 %v376, %v384
    %v393 = vsub.f32 %v377, %v385
    %v394 = vsub.f32 %v378, %v386
    %v395 = vsub.f32 %v379, %v387
    %v396 = vsub.f32 %v380, %v388
    %v397 = vsub.f32 %v381, %v389
    %v398 = vsub.f32 %v382, %v390
    %v399 = vld [vmem:[%s2] sm:$0xff]
    %v400 = vld [vmem:[%s2 + $0x8] sm:$0xff]
    %v401 = vld [vmem:[%s2 + $0x10] sm:$0xff]
    %v402 = vld [vmem:[%s2 + $0x18] sm:$0xff]
    %v403 = vld [vmem:[%s2 + $0x20] sm:$0xff]
    %v404 = vld [vmem:[%s2 + $0x28] sm:$0xff]
    %v405 = vld [vmem:[%s2 + $0x30] sm:$0xff]
    %v406 = vld [vmem:[%s2 + $0x38] sm:$0xff]
    %v407 = vadd.f32 %v391, 1e-05
    %v408 = vadd.f32 %v392, 1e-05
    %v409 = vadd.f32 %v393, 1e-05
    %v410 = vadd.f32 %v394, 1e-05
    %v411 = vadd.f32 %v395, 1e-05
    %v412 = vadd.f32 %v396, 1e-05
    %v413 = vadd.f32 %v397, 1e-05
    %v414 = vadd.f32 %v398, 1e-05
    %v415 = vrsqrt.pop %v407
    %v416 = vrsqrt.pop %v408
    %v417 = vrsqrt.pop %v409
    %v418 = vrsqrt.pop %v410
    %v419 = vrsqrt.pop %v411
    %v420 = vrsqrt.pop %v412
    %v421 = vrsqrt.pop %v413
    %v422 = vrsqrt.pop %v414
    %v423 = vmul.f32 %v399, %v415
    %v424 = vmul.f32 %v400, %v416
    %v425 = vmul.f32 %v401, %v417
    %v426 = vmul.f32 %v402, %v418
    %v427 = vmul.f32 %v403, %v419
    %v428 = vmul.f32 %v404, %v420
    %v429 = vmul.f32 %v405, %v421
    %v430 = vmul.f32 %v406, %v422
    %v431 = vld [vmem:[%s3] sm:$0xff]
    %v432 = vld [vmem:[%s3 + $0x8] sm:$0xff]
    %v433 = vld [vmem:[%s3 + $0x10] sm:$0xff]
    %v434 = vld [vmem:[%s3 + $0x18] sm:$0xff]
    %v435 = vld [vmem:[%s3 + $0x20] sm:$0xff]
    %v436 = vld [vmem:[%s3 + $0x28] sm:$0xff]
    %v437 = vld [vmem:[%s3 + $0x30] sm:$0xff]
    %v438 = vld [vmem:[%s3 + $0x38] sm:$0xff]
    %v439 = vmul.f32 %v367, %v423
    %v440 = vmul.f32 %v368, %v424
    %v441 = vmul.f32 %v369, %v425
    %v442 = vmul.f32 %v370, %v426
    %v443 = vmul.f32 %v371, %v427
    %v444 = vmul.f32 %v372, %v428
    %v445 = vmul.f32 %v373, %v429
    %v446 = vmul.f32 %v374, %v430
    %v447 = vsub.f32 %v431, %v439
    %v448 = vsub.f32 %v432, %v440
    %v449 = vsub.f32 %v433, %v441
    %v450 = vsub.f32 %v434, %v442
    %v451 = vsub.f32 %v435, %v443
    %v452 = vsub.f32 %v436, %v444
    %v453 = vsub.f32 %v437, %v445
    %v454 = vsub.f32 %v438, %v446
    %456 = vset.pattern.permute.xlu0 0
    %457 = vperm.xlu0 %456, %v423
    %v458 = vpop.permute.xlu0 %457
    %461 = vset.pattern.permute.xlu0 0
    %462 = vperm.xlu0 %461, %v424
    %v463 = vpop.permute.xlu0 %462
    %466 = vset.pattern.permute.xlu0 0
    %467 = vperm.xlu0 %466, %v425
    %v468 = vpop.permute.xlu0 %467
    %471 = vset.pattern.permute.xlu0 0
    %472 = vperm.xlu0 %471, %v426
    %v473 = vpop.permute.xlu0 %472
    %476 = vset.pattern.permute.xlu0 0
    %477 = vperm.xlu0 %476, %v427
    %v478 = vpop.permute.xlu0 %477
    %481 = vset.pattern.permute.xlu0 0
    %482 = vperm.xlu0 %481, %v428
    %v483 = vpop.permute.xlu0 %482
    %486 = vset.pattern.permute.xlu0 0
    %487 = vperm.xlu0 %486, %v429
    %v488 = vpop.permute.xlu0 %487
    %491 = vset.pattern.permute.xlu0 0
    %492 = vperm.xlu0 %491, %v430
    %v493 = vpop.permute.xlu0 %492
    %v495 = vmul.f32 %v123, %v458
    %v496 = vmul.f32 %v128, %v463
    %v497 = vmul.f32 %v133, %v468
    %v498 = vmul.f32 %v138, %v473
    %v499 = vmul.f32 %v143, %v478
    %v500 = vmul.f32 %v148, %v483
    %v501 = vmul.f32 %v153, %v488
    %v502 = vmul.f32 %v158, %v493
    %504 = vset.pattern.permute.xlu0 0
    %505 = vperm.xlu0 %504, %v447
    %v506 = vpop.permute.xlu0 %505
    %509 = vset.pattern.permute.xlu0 0
    %510 = vperm.xlu0 %509, %v448
    %v511 = vpop.permute.xlu0 %510
    %514 = vset.pattern.permute.xlu0 0
    %515 = vperm.xlu0 %514, %v449
    %v516 = vpop.permute.xlu0 %515
    %519 = vset.pattern.permute.xlu0 0
    %520 = vperm.xlu0 %519, %v450
    %v521 = vpop.permute.xlu0 %520
    %524 = vset.pattern.permute.xlu0 0
    %525 = vperm.xlu0 %524, %v451
    %v526 = vpop.permute.xlu0 %525
    %529 = vset.pattern.permute.xlu0 0
    %530 = vperm.xlu0 %529, %v452
    %v531 = vpop.permute.xlu0 %530
    %534 = vset.pattern.permute.xlu0 0
    %535 = vperm.xlu0 %534, %v453
    %v536 = vpop.permute.xlu0 %535
    %539 = vset.pattern.permute.xlu0 0
    %540 = vperm.xlu0 %539, %v454
    %v541 = vpop.permute.xlu0 %540
    %v543 = vadd.f32 %v495, %v506
    %v544 = vadd.f32 %v496, %v511
    %v545 = vadd.f32 %v497, %v516
    %v546 = vadd.f32 %v498, %v521
    %v547 = vadd.f32 %v499, %v526
    %v548 = vadd.f32 %v500, %v531
    %v549 = vadd.f32 %v501, %v536
    %v550 = vadd.f32 %v502, %v541
    %v551 = vmax.f32 %v543, 0.0
    %v552 = vmax.f32 %v544, 0.0
    %v553 = vmax.f32 %v545, 0.0
    %v554 = vmax.f32 %v546, 0.0
    %v555 = vmax.f32 %v547, 0.0
    %v556 = vmax.f32 %v548, 0.0
    %v557 = vmax.f32 %v549, 0.0
    %v558 = vmax.f32 %v550, 0.0
    %559 = vst [vmem:[#allocation2] sm:$0xff] %v551
    %560 = vst [vmem:[#allocation2 + $0x8] sm:$0xff] %v552
    %561 = vst [vmem:[#allocation2 + $0x10] sm:$0xff] %v553
    %562 = vst [vmem:[#allocation2 + $0x18] sm:$0xff] %v554
    %563 = vst [vmem:[#allocation2 + $0x20] sm:$0xff] %v555
    %564 = vst [vmem:[#allocation2 + $0x28] sm:$0xff] %v556
    %565 = vst [vmem:[#allocation2 + $0x30] sm:$0xff] %v557
    %566 = vst [vmem:[#allocation2 + $0x38] sm:$0xff] %v558
    %v567 = vmul.f32 %v273, %v458
    %v568 = vmul.f32 %v278, %v463
    %v569 = vmul.f32 %v283, %v468
    %v570 = vmul.f32 %v288, %v473
    %v571 = vmul.f32 %v293, %v478
    %v572 = vmul.f32 %v298, %v483
    %v573 = vmul.f32 %v303, %v488
    %v574 = vmul.f32 %v308, %v493
    %v575 = vadd.f32 %v567, %v506
    %v576 = vadd.f32 %v568, %v511
    %v577 = vadd.f32 %v569, %v516
    %v578 = vadd.f32 %v570, %v521
    %v579 = vadd.f32 %v571, %v526
    %v580 = vadd.f32 %v572, %v531
    %v581 = vadd.f32 %v573, %v536
    %v582 = vadd.f32 %v574, %v541
    %v583 = vmax.f32 %v575, 0.0
    %v584 = vmax.f32 %v576, 0.0
    %v585 = vmax.f32 %v577, 0.0
    %v586 = vmax.f32 %v578, 0.0
    %v587 = vmax.f32 %v579, 0.0
    %v588 = vmax.f32 %v580, 0.0
    %v589 = vmax.f32 %v581, 0.0
    %v590 = vmax.f32 %v582, 0.0
    %s591 = scalar_lea.vmem [#allocation2], 64
    %592 = vst [vmem:[%s591] sm:$0xff] %v583
    %593 = vst [vmem:[%s591 + $0x8] sm:$0xff] %v584
    %594 = vst [vmem:[%s591 + $0x10] sm:$0xff] %v585
    %595 = vst [vmem:[%s591 + $0x18] sm:$0xff] %v586
    %596 = vst [vmem:[%s591 + $0x20] sm:$0xff] %v587
    %597 = vst [vmem:[%s591 + $0x28] sm:$0xff] %v588
    %598 = vst [vmem:[%s591 + $0x30] sm:$0xff] %v589
    %599 = vst [vmem:[%s591 + $0x38] sm:$0xff] %v590
    // Predicated region
    $region18: #{conbr_block.1} parent=1 // pred_check
      _
    $region19: #{conbr_block.1} parent=1 // pred_check_branch
      %601 = sbr.rel (0) target = $region21
    $region20: #{conbr_block.1} parent=1 // pred_region
      %s603 = ssub.s32 2048, 2048
      %604 = vsyncadd [#allocation3], %s603
      %s605 = sshll.u32 [#allocation2], 4
      %s606 = int_to_ptr.vmem [resolvable:$true] %s605
      %611 = dma.vmem_to_hbm [thread:$0]  %s606, 2048, %s4, [#allocation3], 128, 128, 8
    $region21: #{conbr_block.1} parent=1 // pred_fallthru
      _
    // Predicated region
    $region22: #{conbr_block.1} parent=1 // pred_check
      _
    $region23: #{conbr_block.1} parent=1 // pred_check_branch
      %613 = sbr.rel (0) target = $region25
    $region24: #{conbr_block.1} parent=1 // pred_region
      %614 = dma.done [#allocation3], 2048
    $region25: #{conbr_block.1} parent=1 // pred_fallthru
      _
    %615 = vsyncpa [#allocation3], 1

</llo_original>
